<compile_context>
chip_gen: v7x
topology: tpu7x:2x2x1
jax: 0.10.0
libtpu: 0.0.40
codegen_flags: <defaults>
</compile_context>

<pallas_src>
import functools

import jax
import jax.numpy as jnp
from jax.experimental import pallas as pl
from jax.experimental.pallas import tpu as pltpu

LANE = 128


def _mlp_kernel(x_ref, w1_ref, b1_ref, w2_ref, b2_ref, out_ref, *, matmul_dtype):
    # x:  [tb, obs]      w1: [obs, hid]    b1: [1, hid]
    # w2: [hid, n_pad]   b2: [1, n_act]    out: [tb, n_act]   (n_act <= n_pad)
    x = x_ref[...]
    obs = x.shape[1]
    n_act = out_ref.shape[1]

    # ---- Layer 1 on the VPU (K = obs is tiny; avoid MXU push/drain) ----
    h = b1_ref[...] + x[:, 0:1] * w1_ref[0:1, :]          # [tb, hid]
    for k in range(1, obs):                                # obs is static (2)
        h = h + x[:, k:k + 1] * w1_ref[k:k + 1, :]
    h = jnp.maximum(h, 0.0)                                # ReLU, f32 VPU path

    # ---- Layer 2 on the MXU (K = hid = 128), f32 accumulation ----
    if matmul_dtype is not None:
        lhs = h.astype(matmul_dtype)
        rhs = w2_ref[...].astype(matmul_dtype)
    else:
        lhs = h
        rhs = w2_ref[...]
    y = jnp.dot(lhs, rhs, preferred_element_type=jnp.float32)  # [tb, n_pad]

    # Narrow store: only the real action columns go back to HBM.
    out_ref[...] = (y[:, :n_act] + b2_ref[...]).astype(out_ref.dtype)


def pad_w2_for_mxu(w2):
    """Pad w2's output (lane) dim up to a multiple of 128 ONCE at init so the
    in-kernel matmul runs on full MXU tiles.  Extra columns are zero and never
    leave the kernel (the output is stored narrow)."""
    _, n_act = w2.shape
    n_pad = max(LANE, ((n_act + LANE - 1) // LANE) * LANE)
    if n_pad == n_act:
        return w2
    return jnp.pad(w2, ((0, 0), (0, n_pad - n_act)))


@functools.partial(jax.jit, static_argnames=("block_b", "matmul_dtype"))
def mountaincar_dqn_forward(x, w1, b1, w2p, b2, *, block_b=1024,
                            matmul_dtype=jnp.bfloat16):
    """Pallas forward: relu(x @ w1 + b1) @ w2 + b2.

    x:   [batch, obs]     w1: [obs, hid]     b1: [1, hid]
    w2p: [hid, n_pad]     b2: [1, n_act]     ->  [batch, n_act]
    (w2p is w2 pre-padded once via pad_w2_for_mxu; n_act = b2.shape[1].)
    """
    batch, obs = x.shape
    hid = w1.shape[1]
    n_pad = w2p.shape[1]
    n_act = b2.shape[1]

    # Batch tiling: one block if small, otherwise block_b rows per grid step.
    if batch <= block_b:
        tb = batch                      # block == full dim (any size is legal)
        padded_batch = batch
        xp = x
    else:
        tb = block_b                    # multiple of 8 (sublane-aligned)
        padded_batch = ((batch + tb - 1) // tb) * tb
        xp = jnp.pad(x, ((0, padded_batch - batch), (0, 0)))
    grid_b = padded_batch // tb

    kernel = functools.partial(_mlp_kernel, matmul_dtype=matmul_dtype)

    flops = 2 * padded_batch * hid * (obs + n_pad)
    bytes_accessed = 4 * (padded_batch * (obs + n_act)
                          + obs * hid + hid + hid * n_pad + n_act)

    out = pl.pallas_call(
        kernel,
        out_shape=jax.ShapeDtypeStruct((padded_batch, n_act), x.dtype),
        grid=(grid_b,),
        in_specs=[
            pl.BlockSpec((tb, obs), lambda i: (i, 0)),        # x: tiled over batch
            pl.BlockSpec((obs, hid), lambda i: (0, 0)),       # weights stay resident
            pl.BlockSpec((1, hid), lambda i: (0, 0)),
            pl.BlockSpec((hid, n_pad), lambda i: (0, 0)),
            pl.BlockSpec((1, n_act), lambda i: (0, 0)),
        ],
        out_specs=pl.BlockSpec((tb, n_act), lambda i: (i, 0)),  # narrow output
        compiler_params=pltpu.CompilerParams(
            dimension_semantics=("parallel",),                # shard batch across TCs
        ),
        cost_estimate=pl.CostEstimate(
            flops=flops, transcendentals=0, bytes_accessed=bytes_accessed),
    )(xp, w1, b1, w2p, b2)

    return out if padded_batch == batch else out[:batch]


def init_params(key, obs_size, n_actions, hid_size):
    """Deterministic init mimicking PyTorch nn.Linear default (uniform +/- 1/sqrt(fan_in))."""
    k1, k2, k3, k4 = jax.random.split(key, 4)
    bound1 = 1.0 / (obs_size ** 0.5)
    bound2 = 1.0 / (hid_size ** 0.5)
    # Stored already transposed: [in_features, out_features].
    w1 = jax.random.uniform(k1, (obs_size, hid_size), jnp.float32, -bound1, bound1)
    b1 = jax.random.uniform(k2, (1, hid_size), jnp.float32, -bound1, bound1)
    w2 = jax.random.uniform(k3, (hid_size, n_actions), jnp.float32, -bound2, bound2)
    b2 = jax.random.uniform(k4, (1, n_actions), jnp.float32, -bound2, bound2)
    return w1, b1, w2, b2


def _reference(x, w1, b1, w2, b2):
    return jnp.maximum(x @ w1 + b1, 0.0) @ w2 + b2


if __name__ == "__main__":
    # MountainCar-v0: obs_size=2, n_actions=3; default hid_size=128.
    obs_size, n_actions, hid_size = 2, 3, 128

    key = jax.random.PRNGKey(0)
    k_x1, k_x2, k_p = jax.random.split(key, 3)
    w1, b1, w2, b2 = init_params(k_p, obs_size, n_actions, hid_size)
    w2p = pad_w2_for_mxu(w2)   # padding hoisted out of the per-call forward

    ok = True

    # Case 1: small batch (single block, grid=(1,)) — the DQN act() path.
    # Exact f32 MXU inputs, tight tolerance.
    x_small = jax.random.normal(k_x1, (8, obs_size), jnp.float32)
    out_s = jax.block_until_ready(
        mountaincar_dqn_forward(x_small, w1, b1, w2p, b2, matmul_dtype=None))
    ref_s = _reference(x_small, w1, b1, w2, b2)
    ok &= out_s.shape == (8, n_actions)
    ok &= bool(jnp.allclose(out_s, ref_s, atol=1e-4, rtol=1e-4))

    # Case 2: larger batch (non-multiple of tile → padded rows sliced off),
    # multi-step batch-parallel grid, default bf16 MXU inputs (f32 accumulate).
    x_big = jax.random.normal(k_x2, (200, obs_size), jnp.float32)
    out_b = jax.block_until_ready(
        mountaincar_dqn_forward(x_big, w1, b1, w2p, b2, block_b=64))
    ref_b = _reference(x_big, w1, b1, w2, b2)
    ok &= out_b.shape == (200, n_actions)
    ok &= bool(jnp.allclose(out_b, ref_b, atol=5e-2, rtol=5e-2))

    assert ok, "mismatch vs reference"
    print("KERNEL_OK")
</pallas_src>

<mosaic_0001>
module attributes {stable_mosaic.version = 11 : i64} {
  func.func @_mlp_kernel(%arg0: i32, %arg1: memref<8x2xf32, #tpu.memory_space<vmem>>, %arg2: memref<2x128xf32, #tpu.memory_space<vmem>>, %arg3: memref<1x128xf32, #tpu.memory_space<vmem>>, %arg4: memref<128x128xf32, #tpu.memory_space<vmem>>, %arg5: memref<1x3xf32, #tpu.memory_space<vmem>>, %arg6: memref<8x3xf32, #tpu.memory_space<vmem>>) attributes {dimension_semantics = [#tpu.dimension_semantics<parallel>], iteration_bounds = array<i64: 1>, scalar_prefetch = 0 : i64, scratch_operands = 0 : i64, tpu.core_type = #tpu.core_type<tc>, window_params = [{transform_indices = @transform_0, window_bounds = array<i64: 8, 2>}, {pipeline_mode = #tpu.pipeline_mode<synchronous>, transform_indices = @transform_1, window_bounds = array<i64: 2, 128>}, {pipeline_mode = #tpu.pipeline_mode<synchronous>, transform_indices = @transform_2, window_bounds = array<i64: 1, 128>}, {pipeline_mode = #tpu.pipeline_mode<synchronous>, transform_indices = @transform_3, window_bounds = array<i64: 128, 128>}, {pipeline_mode = #tpu.pipeline_mode<synchronous>, transform_indices = @transform_4, window_bounds = array<i64: 1, 3>}, {transform_indices = @transform_5, window_bounds = array<i64: 8, 3>}]} {
    %c0 = arith.constant 0 : index
    %c0_0 = arith.constant 0 : index
    %0 = vector.load %arg1[%c0, %c0_0] : memref<8x2xf32, #tpu.memory_space<vmem>>, vector<8x2xf32>
    %c0_1 = arith.constant 0 : index
    %c0_2 = arith.constant 0 : index
    %1 = vector.load %arg3[%c0_1, %c0_2] : memref<1x128xf32, #tpu.memory_space<vmem>>, vector<1x128xf32>
    %2 = vector.extract_strided_slice %0 {offsets = [0, 0], sizes = [8, 1], strides = [1, 1]} : vector<8x2xf32> to vector<8x1xf32>
    %c0_3 = arith.constant 0 : index
    %c0_4 = arith.constant 0 : index
    %3 = vector.load %arg2[%c0_3, %c0_4] : memref<2x128xf32, #tpu.memory_space<vmem>>, vector<1x128xf32>
    %4 = vector.broadcast %2 : vector<8x1xf32> to vector<8x128xf32>
    %5 = vector.broadcast %3 : vector<1x128xf32> to vector<8x128xf32>
    %6 = arith.mulf %4, %5 : vector<8x128xf32>
    %7 = vector.broadcast %1 : vector<1x128xf32> to vector<8x128xf32>
    %8 = arith.addf %7, %6 : vector<8x128xf32>
    %9 = vector.extract_strided_slice %0 {offsets = [0, 1], sizes = [8, 1], strides = [1, 1]} : vector<8x2xf32> to vector<8x1xf32>
    %c1 = arith.constant 1 : index
    %c0_5 = arith.constant 0 : index
    %10 = vector.load %arg2[%c1, %c0_5] : memref<2x128xf32, #tpu.memory_space<vmem>>, vector<1x128xf32>
    %11 = vector.broadcast %9 : vector<8x1xf32> to vector<8x128xf32>
    %12 = vector.broadcast %10 : vector<1x128xf32> to vector<8x128xf32>
    %13 = arith.mulf %11, %12 : vector<8x128xf32>
    %14 = arith.addf %8, %13 : vector<8x128xf32>
    %cst = arith.constant 0.000000e+00 : f32
    %15 = vector.broadcast %cst : f32 to vector<8x128xf32>
    %16 = arith.maximumf %14, %15 : vector<8x128xf32>
    %c0_6 = arith.constant 0 : index
    %c0_7 = arith.constant 0 : index
    %17 = vector.load %arg4[%c0_6, %c0_7] : memref<128x128xf32, #tpu.memory_space<vmem>>, vector<128x128xf32>
    %cst_8 = arith.constant dense<0.000000e+00> : vector<8x128xf32>
    %18 = tpu.matmul %16, %17, %cst_8 {dimension_numbers = #tpu.dot_dimension_numbers<[1], [0], [0], [1], [0, 0, 1, 1], [], []>} : vector<8x128xf32>, vector<128x128xf32>, vector<8x128xf32> -> vector<8x128xf32>
    %19 = vector.extract_strided_slice %18 {offsets = [0, 0], sizes = [8, 3], strides = [1, 1]} : vector<8x128xf32> to vector<8x3xf32>
    %c0_9 = arith.constant 0 : index
    %c0_10 = arith.constant 0 : index
    %20 = vector.load %arg5[%c0_9, %c0_10] : memref<1x3xf32, #tpu.memory_space<vmem>>, vector<1x3xf32>
    %21 = vector.broadcast %20 : vector<1x3xf32> to vector<8x3xf32>
    %22 = arith.addf %19, %21 : vector<8x3xf32>
    %c0_11 = arith.constant 0 : index
    %c0_12 = arith.constant 0 : index
    %23 = vector.load %arg6[%c0_11, %c0_12] : memref<8x3xf32, #tpu.memory_space<vmem>>, vector<8x3xf32>
    tpu.vector_store %arg6[%c0_11, %c0_12], %22 {strides = array<i32>} : memref<8x3xf32, #tpu.memory_space<vmem>>, vector<8x3xf32>,
    return
  }
  func.func @transform_0(%arg0: i32) -> (i32, i32) {
    %c0_i32 = arith.constant 0 : i32
    %c0_i32_0 = arith.constant 0 : i32
    return %arg0, %c0_i32 : i32, i32
  }
  func.func @transform_1(%arg0: i32) -> (i32, i32) {
    %c0_i32 = arith.constant 0 : i32
    %c0_i32_0 = arith.constant 0 : i32
    %c0_i32_1 = arith.constant 0 : i32
    return %c0_i32, %c0_i32_0 : i32, i32
  }
  func.func @transform_2(%arg0: i32) -> (i32, i32) {
    %c0_i32 = arith.constant 0 : i32
    %c0_i32_0 = arith.constant 0 : i32
    %c0_i32_1 = arith.constant 0 : i32
    return %c0_i32, %c0_i32_0 : i32, i32
  }
  func.func @transform_3(%arg0: i32) -> (i32, i32) {
    %c0_i32 = arith.constant 0 : i32
    %c0_i32_0 = arith.constant 0 : i32
    %c0_i32_1 = arith.constant 0 : i32
    return %c0_i32, %c0_i32_0 : i32, i32
  }
  func.func @transform_4(%arg0: i32) -> (i32, i32) {
    %c0_i32 = arith.constant 0 : i32
    %c0_i32_0 = arith.constant 0 : i32
    %c0_i32_1 = arith.constant 0 : i32
    return %c0_i32, %c0_i32_0 : i32, i32
  }
  func.func @transform_5(%arg0: i32) -> (i32, i32) {
    %c0_i32 = arith.constant 0 : i32
    %c0_i32_0 = arith.constant 0 : i32
    return %arg0, %c0_i32 : i32, i32
  }
}

</mosaic_0001>

<llo_original>
// kernel: mountaincar_dqn_forward.1
$region0: #{mountaincar_dqn_forward.1}
  #allocation0 [shape = 'u32[]', space=smem, size = 0x4, offset = 0x4, fixed_abs, tag = 'smem constant byte address 0x4 - core index']
  #allocation1 [shape = 'u32[144,128]{1,0:T(1,128)}', space=vmem, size = 0x12000, scoped, tag = 'internal scratch']
  %s0 = inlined_call_operand.vmem [shape: f32[8,2], index: 0, kind: input, shape index: {}]
  %s1 = inlined_call_operand.vmem [shape: f32[2,128], index: 1, kind: input, shape index: {}]
  %s2 = inlined_call_operand.vmem [shape: f32[1,128], index: 2, kind: input, shape index: {}]
  %s3 = inlined_call_operand.hbm [shape: f32[128,128], index: 3, kind: input, shape index: {}]
  %s4 = inlined_call_operand.vmem [shape: f32[1,3], index: 4, kind: input, shape index: {}]
  %s5 = inlined_call_operand.vmem [shape: f32[8,3], index: 5, kind: output, shape index: {}]
  %s6 = sld [smem:[#allocation0]]
  $region34: #{mountaincar_dqn_forward.1} parent=0
    _
  %s8 = ssub.s32 1, %s6
  %s9 = scalar_select 0, %s8, %s6
  $region1: #{mountaincar_dqn_forward.1} parent=0
    #allocation2 [shape = 'u8[65536]{0}', space=vmem, size = 0x10000, scoped, tag = 'input window, operand 3, single buffered']
    #allocation3 [shape = 's32[1]{0}', space=sflag, size = 0x4, scoped, tag = 'scoped memory for mountaincar_dqn_forward.1']
    %10 = vsyncpa [#allocation3], 0
    // Predicated region
    $region2: #{mountaincar_dqn_forward.1} parent=1 // pred_check
      _
    $region3: #{mountaincar_dqn_forward.1} parent=1 // pred_check_branch
      %12 = sbr.rel (0) target = $region5
    $region4: #{mountaincar_dqn_forward.1} parent=1 // pred_region
      _
    $region5: #{mountaincar_dqn_forward.1} parent=1 // pred_fallthru
      _
    // Predicated region
    $region6: #{mountaincar_dqn_forward.1} parent=1 // pred_check
      _
    $region7: #{mountaincar_dqn_forward.1} parent=1 // pred_check_branch
      %14 = sbr.rel (0) target = $region9
    $region8: #{mountaincar_dqn_forward.1} parent=1 // pred_region
      _
    $region9: #{mountaincar_dqn_forward.1} parent=1 // pred_fallthru
      _
    // Predicated region
    $region10: #{mountaincar_dqn_forward.1} parent=1 // pred_check
      _
    $region11: #{mountaincar_dqn_forward.1} parent=1 // pred_check_branch
      %16 = sbr.rel (0) target = $region13
    $region12: #{mountaincar_dqn_forward.1} parent=1 // pred_region
      _
    $region13: #{mountaincar_dqn_forward.1} parent=1 // pred_fallthru
      _
    // Predicated region
    $region14: #{mountaincar_dqn_forward.1} parent=1 // pred_check
      _
    $region15: #{mountaincar_dqn_forward.1} parent=1 // pred_check_branch
      %18 = sbr.rel (0) target = $region17
    $region16: #{mountaincar_dqn_forward.1} parent=1 // pred_region
      %s20 = ssub.s32 2048, 2048
      %21 = vsyncadd [#allocation3], %s20
      %s22 = sshll.u32 [#allocation2], 4
      %s23 = int_to_ptr.vmem [resolvable:$true] %s22
      %28 = dma.hbm_to_vmem [thread:$0]  %s3, 2048, %s23, [#allocation3], 128, 128, 8
    $region17: #{mountaincar_dqn_forward.1} parent=1 // pred_fallthru
      _
    // Predicated region
    $region18: #{mountaincar_dqn_forward.1} parent=1 // pred_check
      _
    $region19: #{mountaincar_dqn_forward.1} parent=1 // pred_check_branch
      %30 = sbr.rel (0) target = $region21
    $region20: #{mountaincar_dqn_forward.1} parent=1 // pred_region
      _
    $region21: #{mountaincar_dqn_forward.1} parent=1 // pred_fallthru
      _
    // Predicated region
    $region22: #{mountaincar_dqn_forward.1} parent=1 // pred_check
      _
    $region23: #{mountaincar_dqn_forward.1} parent=1 // pred_check_branch
      %32 = sbr.rel (0) target = $region25
    $region24: #{mountaincar_dqn_forward.1} parent=1 // pred_region
      %33 = dma.done [#allocation3], 2048
    $region25: #{mountaincar_dqn_forward.1} parent=1 // pred_fallthru
      _
    %v34 = vld [vmem:[%s0] sm:$0xff]
    %v35 = vld [vmem:[%s2] sm:$0x1]
    %v36 = vld [vmem:[%s1] sm:$0x1]
    %38 = vset.pattern.permute.xlu0 0
    %39 = vperm.xlu0 %38, %v34
    %v40 = vpop.permute.xlu0 %39
    %v42 = vlaneseq
    %v43 = vshrl.u32 %v42, 7
    %v44 = vsub.s32 0, %v43
    %v45 = vrot.slane %v36, %v44
    %v46 = vmul.f32 %v40, %v45
    %v48 = vlaneseq
    %v49 = vshrl.u32 %v48, 7
    %v50 = vsub.s32 0, %v49
    %v51 = vrot.slane %v35, %v50
    %v53 = vadd.f32 %v51, %v46
    %v54 = vld [vmem:[%s1 + $0x1] sm:$0x1]
    %55 = vset.pattern.permute.xlu0 1
    %56 = vperm.xlu0 %55, %v34
    %v57 = vpop.permute.xlu0 %56
    %v59 = vlaneseq
    %v60 = vshrl.u32 %v59, 7
    %v61 = vsub.s32 0, %v60
    %v62 = vrot.slane %v54, %v61
    %v63 = vmul.f32 %v57, %v62
    %v64 = vadd.f32 %v53, %v63
    %v65 = vmax.f32 %v64, 0.0
    %v66 = vld [vmem:[#allocation2] sm:$0xff]
    %v67 = vld [vmem:[#allocation2 + $0x8] sm:$0xff]
    %v68 = vld [vmem:[#allocation2 + $0x10] sm:$0xff]
    %v69 = vld [vmem:[#allocation2 + $0x18] sm:$0xff]
    %v70 = vld [vmem:[#allocation2 + $0x20] sm:$0xff]
    %v71 = vld [vmem:[#allocation2 + $0x28] sm:$0xff]
    %v72 = vld [vmem:[#allocation2 + $0x30] sm:$0xff]
    %v73 = vld [vmem:[#allocation2 + $0x38] sm:$0xff]
    %v74 = vld [vmem:[#allocation2 + $0x40] sm:$0xff]
    %v75 = vld [vmem:[#allocation2 + $0x48] sm:$0xff]
    %v76 = vld [vmem:[#allocation2 + $0x50] sm:$0xff]
    %v77 = vld [vmem:[#allocation2 + $0x58] sm:$0xff]
    %v78 = vld [vmem:[#allocation2 + $0x60] sm:$0xff]
    %v79 = vld [vmem:[#allocation2 + $0x68] sm:$0xff]
    %v80 = vld [vmem:[#allocation2 + $0x70] sm:$0xff]
    %v81 = vld [vmem:[#allocation2 + $0x78] sm:$0xff]
    %82 = vmatprep.subr.mxu0 0.0
    %83 = vmatpush1.msra.mxu0 %v66
    %84 = vmatprep.subr.mxu0 0.0
    %85 = vmatpush1.msra.mxu0 %v67
    %86 = vmatprep.subr.mxu0 0.0
    %87 = vmatpush1.msra.mxu0 %v68
    %88 = vmatprep.subr.mxu0 0.0
    %89 = vmatpush1.msra.mxu0 %v69
    %90 = vmatprep.subr.mxu0 0.0
    %91 = vmatpush1.msra.mxu0 %v70
    %92 = vmatprep.subr.mxu0 0.0
    %93 = vmatpush1.msra.mxu0 %v71
    %94 = vmatprep.subr.mxu0 0.0
    %95 = vmatpush1.msra.mxu0 %v72
    %96 = vmatprep.subr.mxu0 0.0
    %97 = vmatpush1.msra.mxu0 %v73
    %98 = vmatprep.subr.mxu0 0.0
    %99 = vmatpush1.msra.mxu0 %v74
    %100 = vmatprep.subr.mxu0 0.0
    %101 = vmatpush1.msra.mxu0 %v75
    %102 = vmatprep.subr.mxu0 0.0
    %103 = vmatpush1.msra.mxu0 %v76
    %104 = vmatprep.subr.mxu0 0.0
    %105 = vmatpush1.msra.mxu0 %v77
    %106 = vmatprep.subr.mxu0 0.0
    %107 = vmatpush1.msra.mxu0 %v78
    %108 = vmatprep.subr.mxu0 0.0
    %109 = vmatpush1.msra.mxu0 %v79
    %110 = vmatprep.subr.mxu0 0.0
    %111 = vmatpush1.msra.mxu0 %v80
    %112 = vmatprep.subr.mxu0 0.0
    %113 = vmatpush1.msra.mxu0 %v81
    %114 = vmatprep.subr.mxu0 0.0
    %115 = vmatpush1.msra.mxu0 0.0
    %116 = vmatprep.subr.mxu0 0.0
    %117 = vmatpush1.msra.mxu0 0.0
    %118 = vmatprep.subr.mxu0 0.0
    %119 = vmatpush1.msra.mxu0 0.0
    %120 = vmatprep.subr.mxu0 0.0
    %121 = vmatpush1.msra.mxu0 0.0
    %122 = vmatprep.subr.mxu0 0.0
    %123 = vmatpush1.msra.mxu0 0.0
    %124 = vmatprep.subr.mxu0 0.0
    %125 = vmatpush1.msra.mxu0 0.0
    %126 = vmatprep.subr.mxu0 0.0
    %127 = vmatpush1.msra.mxu0 0.0
    %128 = vmatprep.subr.mxu0 0.0
    %129 = vmatpush1.msra.mxu0 0.0
    %130 = vmatprep.subr.mxu0 0.0
    %131 = vmatpush1.msra.mxu0 0.0
    %132 = vmatprep.subr.mxu0 0.0
    %133 = vmatpush1.msra.mxu0 0.0
    %134 = vmatprep.subr.mxu0 0.0
    %135 = vmatpush1.msra.mxu0 0.0
    %136 = vmatprep.subr.mxu0 0.0
    %137 = vmatpush1.msra.mxu0 0.0
    %138 = vmatprep.subr.mxu0 0.0
    %139 = vmatpush1.msra.mxu0 0.0
    %140 = vmatprep.subr.mxu0 0.0
    %141 = vmatpush1.msra.mxu0 0.0
    %142 = vmatprep.subr.mxu0 0.0
    %143 = vmatpush1.msra.mxu0 0.0
    %144 = vmatprep.subr.mxu0 0.0
    %145 = vmatpush1.msra.mxu0 0.0
    %146 = vmatprep.mubr.f32.mxu0 0.0
    %147 = vmatmul.mubr.f32.gmra.mrb[0].mxu0 %v65
    %v148 = vpop.f32.mrb[0].mxu0
    %v149 = vadd.f32 0.0, %v148
    %v150 = vpop.f32.mrb[0].mxu0
    %151 = vdwg.mxu0
    %v152 = vld [vmem:[%s4] sm:$0x1]
    %v154 = vlaneseq
    %v155 = vshrl.u32 %v154, 7
    %v156 = vsub.s32 0, %v155
    %v157 = vrot.slane %v152, %v156
    %v159 = vadd.f32 %v149, %v157
    %vm160 = vcmask 23552
    %161 = vst.msk [vmem:[%s5] sm:$0xff] %vm160, %v159
    // Predicated region
    $region26: #{mountaincar_dqn_forward.1} parent=1 // pred_check
      _
    $region27: #{mountaincar_dqn_forward.1} parent=1 // pred_check_branch
      %163 = sbr.rel (0) target = $region29
    $region28: #{mountaincar_dqn_forward.1} parent=1 // pred_region
      _
    $region29: #{mountaincar_dqn_forward.1} parent=1 // pred_fallthru
      _
    // Predicated region
    $region30: #{mountaincar_dqn_forward.1} parent=1 // pred_check
      _
    $region31: #{mountaincar_dqn_forward.1} parent=1 // pred_check_branch
      %165 = sbr.rel (0) target = $region33
    $region32: #{mountaincar_dqn_forward.1} parent=1 // pred_region
      _
    $region33: #{mountaincar_dqn_forward.1} parent=1 // pred_fallthru
      _
    %166 = vsyncpa [#allocation3], 1

</llo_original>
